<compile_context>
chip_gen: v5e
topology: v5e:2x2
jax: 0.10.0
libtpu: 0.0.40
codegen_flags: <defaults>
</compile_context>

<pallas_src>
import jax
import jax.numpy as jnp
from jax.experimental import pallas as pl
from jax.experimental.pallas import tpu as pltpu


def _round_up(x, m):
    return (x + m - 1) // m * m


def _cdiv(a, b):
    return (a + b - 1) // b


# Conservative working-set budget so the same tiling fits every generation
# (v7x: 32 MiB scoped / 64 MiB physical VMEM; v5e/v6e have 128 MiB physical).
_VMEM_BUDGET = 28 * 1024 * 1024


def _choose_tiles(N, K, E, in_itemsize):
    """TN = whole 128-rounded E (single E tile); TK a 128-multiple dividing the
    rounded K evenly; TM = N_pad / nt, with nt grown until the double-buffered
    working set fits the VMEM budget."""
    K128 = _round_up(K, 128)
    nk = _cdiv(K128, 1024)                       # number of K tiles
    TK = _round_up(_cdiv(K128, nk), 128)         # 128-multiple, no dead K tile
    K_pad = TK * nk

    TN = _round_up(E, 128)                       # whole embedding dim in lanes

    nt = 1                                       # M tiles per batch item
    while True:
        TM = _round_up(_cdiv(_round_up(N, 8), nt), 8)
        vmem = (2 * (TM * TK + TK * TN) * in_itemsize   # patches + weight, double buffered
                + 2 * TM * TN * 4                        # pos rows (f32), double buffered
                + 2 * TM * TN * 4                        # output (f32), double buffered
                + TM * TN * 4)                           # f32 accumulator (worst case)
        if (TM <= 1024 and vmem <= _VMEM_BUDGET) or TM <= 8:
            break
        nt += 1
    N_pad = TM * nt
    return TM, TN, TK, N_pad, K_pad, nk, nt, vmem


def _matmul_pos_kernel_single_k(p_ref, w_ref, pos_ref, o_ref):
    # p: (TM, TK) bf16, w: (TK, TN) bf16, pos: (TM, TN) f32, o: (TM, TN) f32.
    # Single K step: no accumulator round-trip, direct store.
    o_ref[...] = (jnp.dot(p_ref[...], w_ref[...],
                          preferred_element_type=jnp.float32)
                  + pos_ref[...]).astype(o_ref.dtype)


def _matmul_pos_kernel_multi_k(p_ref, w_ref, pos_ref, o_ref, acc_ref):
    k = pl.program_id(1)

    @pl.when(k == 0)
    def _():
        acc_ref[...] = jnp.zeros_like(acc_ref)

    acc_ref[...] += jnp.dot(p_ref[...], w_ref[...],
                            preferred_element_type=jnp.float32)

    @pl.when(k == pl.num_programs(1) - 1)
    def _():
        o_ref[...] = (acc_ref[...] + pos_ref[...]).astype(o_ref.dtype)


def _patch_matmul(patches, w2d, pos_bias, compute_dtype, out_dtype):
    """patches: (B, N, K). w2d: (K, E). pos_bias: (N, E) f32 (pos rows + conv bias).
    Returns (B, N, E) = patches @ w2d + pos_bias, in out_dtype."""
    B, N, K = patches.shape
    E = w2d.shape[1]
    in_itemsize = jnp.dtype(compute_dtype).itemsize
    TM, TN, TK, N_pad, K_pad, nk, nt, vmem_est = _choose_tiles(N, K, E, in_itemsize)

    patches = patches.astype(compute_dtype)
    w2d = w2d.astype(compute_dtype)
    pos_bias = pos_bias.astype(jnp.float32)

    # Zero-pad only when actually needed (the pad is an extra HBM pass on the
    # big array). Padded K columns must be zero (they feed the reduction);
    # padded N rows / E columns are sliced off afterwards.
    if N_pad != N or K_pad != K:
        patches = jnp.pad(patches, ((0, 0), (0, N_pad - N), (0, K_pad - K)))
    if K_pad != K or TN != E:
        w2d = jnp.pad(w2d, ((0, K_pad - K), (0, TN - E)))
    if N_pad != N or TN != E:
        pos_bias = jnp.pad(pos_bias, ((0, N_pad - N), (0, TN - E)))

    patches = patches.reshape(B * N_pad, K_pad)
    M_pad = B * N_pad
    grid = (M_pad // TM, nk)

    if nt == 1:
        pos_index_map = lambda i, k: (0, 0)          # constant -> stays VMEM resident
    else:
        pos_index_map = lambda i, k: (i % nt, 0)

    if nk == 1:
        kernel = _matmul_pos_kernel_single_k
        scratch = []
    else:
        kernel = _matmul_pos_kernel_multi_k
        scratch = [pltpu.VMEM((TM, TN), jnp.float32)]

    cost = pl.CostEstimate(
        flops=2 * M_pad * K_pad * TN,
        transcendentals=0,
        bytes_accessed=(M_pad * K_pad * in_itemsize      # patches (read once)
                        + K_pad * TN * in_itemsize       # weight
                        + N_pad * TN * 4                 # pos rows
                        + M_pad * TN * 4),               # output
    )

    emb = pl.pallas_call(
        kernel,
        out_shape=jax.ShapeDtypeStruct((M_pad, TN), jnp.float32),
        grid_spec=pltpu.PrefetchScalarGridSpec(
            num_scalar_prefetch=0,
            grid=grid,
            in_specs=[
                pl.BlockSpec((TM, TK), lambda i, k: (i, k)),
                pl.BlockSpec((TK, TN), lambda i, k: (k, 0)),   # constant in i -> resident
                pl.BlockSpec((TM, TN), pos_index_map),
            ],
            out_specs=pl.BlockSpec((TM, TN), lambda i, k: (i, 0)),
            scratch_shapes=scratch,
        ),
        compiler_params=pltpu.CompilerParams(
            dimension_semantics=("parallel", "arbitrary"),
            vmem_limit_bytes=int(min(48 * 1024 * 1024,
                                     max(32 * 1024 * 1024, 2 * vmem_est))),
        ),
        cost_estimate=cost,
    )(patches, w2d, pos_bias)

    return emb.reshape(B, N_pad, TN)[:, :N, :E].astype(out_dtype)


def patch_embedding_forward(x, conv_w, conv_b, class_emb, pos_emb, patch_size,
                            *, compute_dtype=jnp.bfloat16, force_pallas=False):
    """x: (B, C, H, W) f32. conv_w: (E, C, P, P). conv_b: (E,).
    class_emb: (1, 1, E). pos_emb: (1, N+1, E). Returns (B, N+1, E)."""
    B, C, H, W = x.shape
    P = patch_size
    E = conv_w.shape[0]
    Hp, Wp = H // P, W // P
    N = Hp * Wp
    K = C * P * P
    out_dtype = x.dtype

    # ---- patchify glue (pure JAX, one relayout pass; matches Conv2d k=P, s=P) ----
    # (B,C,H,W) -> (B,C,Hp,P,Wp,P) -> (B,Hp,Wp,C,P,P) -> (B, N, K)
    patches = x.reshape(B, C, Hp, P, Wp, P).transpose(0, 2, 4, 1, 3, 5).reshape(B, N, K)
    w2d = conv_w.reshape(E, K).T                                  # (K, E); inner (C,P,P) order matches
    # conv bias folded into the positional patch rows; added in the kernel epilogue.
    pos_bias = pos_emb[0, 1:, :] + conv_b[None, :]                # (N, E) f32

    if not force_pallas and (B * N < 512 or E < 128):
        # Tiny shapes: per-step Pallas overhead dominates; a plain dot is faster.
        emb = (jnp.dot(patches.reshape(B * N, K).astype(compute_dtype),
                       w2d.astype(compute_dtype),
                       preferred_element_type=jnp.float32)
               .reshape(B, N, E) + pos_bias[None]).astype(out_dtype)
    else:
        emb = _patch_matmul(patches, w2d, pos_bias, compute_dtype, out_dtype)

    # Class-token row is batch-invariant: compute once, broadcast.
    cls_token = jnp.broadcast_to((class_emb + pos_emb[:, :1, :]).astype(out_dtype), (B, 1, E))
    # TODO(synk): embedding dropout (p=0.1) and the `pretraining` masking branch omitted (eval mode).
    return jnp.concatenate([cls_token, emb], axis=1)              # (B, N+1, E)


def reference_forward(x, conv_w, conv_b, class_emb, pos_emb, patch_size):
    """Pure-JAX f32 reference replicating the PyTorch forward (eval mode)."""
    B = x.shape[0]
    y = jax.lax.conv_general_dilated(
        x, conv_w,
        window_strides=(patch_size, patch_size),
        padding="VALID",
        dimension_numbers=("NCHW", "OIHW", "NCHW"),
    ) + conv_b.reshape(1, -1, 1, 1)
    B_, E, Hp, Wp = y.shape
    y = y.reshape(B_, E, Hp * Wp).transpose(0, 2, 1)              # (B, N, E)
    cls = jnp.broadcast_to(class_emb, (B, 1, class_emb.shape[-1]))
    return jnp.concatenate([cls, y], axis=1) + pos_emb


if __name__ == "__main__":
    # Small shapes consistent with the module:
    # batch=2, in_channels=4, img_size=16, patch_size=8, embedding_dim=32
    B, C, IMG, P, E = 2, 4, 16, 8, 32
    N = (IMG // P) ** 2

    key = jax.random.PRNGKey(0)
    kx, kw, kb, kc, kp = jax.random.split(key, 5)
    x = jax.random.normal(kx, (B, C, IMG, IMG), dtype=jnp.float32)
    conv_w = jax.random.normal(kw, (E, C, P, P), dtype=jnp.float32) * 0.02
    conv_b = jax.random.normal(kb, (E,), dtype=jnp.float32) * 0.02
    class_emb = jax.random.normal(kc, (1, 1, E), dtype=jnp.float32)
    pos_emb = jax.random.normal(kp, (1, N + 1, E), dtype=jnp.float32)

    # force_pallas=True so the Pallas path is exercised even at demo sizes.
    out = patch_embedding_forward(x, conv_w, conv_b, class_emb, pos_emb, P,
                                  force_pallas=True)
    out = jax.block_until_ready(out)

    ref = reference_forward(x, conv_w, conv_b, class_emb, pos_emb, P)
    assert out.shape == (B, N + 1, E), out.shape
    # bf16 operands / f32 accumulation -> loosened tolerance vs. the f32 reference.
    assert jnp.allclose(out, ref, atol=2e-2, rtol=2e-2), float(jnp.max(jnp.abs(out - ref)))

    print("KERNEL_OK")
</pallas_src>

<mosaic_0001>
module attributes {stable_mosaic.version = 11 : i64} {
  func.func @_matmul_pos_kernel_single_k(%arg0: i32, %arg1: i32, %arg2: memref<8x256xbf16, #tpu.memory_space<vmem>>, %arg3: memref<256x128xbf16, #tpu.memory_space<vmem>>, %arg4: memref<8x128xf32, #tpu.memory_space<vmem>>, %arg5: memref<8x128xf32, #tpu.memory_space<vmem>>) attributes {dimension_semantics = [#tpu.dimension_semantics<parallel>, #tpu.dimension_semantics<arbitrary>], iteration_bounds = array<i64: 2, 1>, scalar_prefetch = 0 : i64, scratch_operands = 0 : i64, tpu.core_type = #tpu.core_type<tc>, window_params = [{transform_indices = @transform_0, window_bounds = array<i64: 8, 256>}, {transform_indices = @transform_1, window_bounds = array<i64: 256, 128>}, {pipeline_mode = #tpu.pipeline_mode<synchronous>, transform_indices = @transform_2, window_bounds = array<i64: 8, 128>}, {transform_indices = @transform_3, window_bounds = array<i64: 8, 128>}]} {
    %c0 = arith.constant 0 : index
    %c0_0 = arith.constant 0 : index
    %0 = vector.load %arg2[%c0, %c0_0] : memref<8x256xbf16, #tpu.memory_space<vmem>>, vector<8x256xbf16>
    %c0_1 = arith.constant 0 : index
    %c0_2 = arith.constant 0 : index
    %1 = vector.load %arg3[%c0_1, %c0_2] : memref<256x128xbf16, #tpu.memory_space<vmem>>, vector<256x128xbf16>
    %cst = arith.constant dense<0.000000e+00> : vector<8x128xf32>
    %2 = tpu.matmul %0, %1, %cst {dimension_numbers = #tpu.dot_dimension_numbers<[1], [0], [0], [1], [0, 0, 1, 1], [], []>} : vector<8x256xbf16>, vector<256x128xbf16>, vector<8x128xf32> -> vector<8x128xf32>
    %c0_3 = arith.constant 0 : index
    %c0_4 = arith.constant 0 : index
    %3 = vector.load %arg4[%c0_3, %c0_4] : memref<8x128xf32, #tpu.memory_space<vmem>>, vector<8x128xf32>
    %4 = arith.addf %2, %3 : vector<8x128xf32>
    %c0_5 = arith.constant 0 : index
    %c0_6 = arith.constant 0 : index
    %5 = vector.load %arg5[%c0_5, %c0_6] : memref<8x128xf32, #tpu.memory_space<vmem>>, vector<8x128xf32>
    tpu.vector_store %arg5[%c0_5, %c0_6], %4 {strides = array<i32>} : memref<8x128xf32, #tpu.memory_space<vmem>>, vector<8x128xf32>,
    return
  }
  func.func @transform_0(%arg0: i32, %arg1: i32) -> (i32, i32) {
    %c0_i32 = arith.constant 0 : i32
    return %arg0, %arg1 : i32, i32
  }
  func.func @transform_1(%arg0: i32, %arg1: i32) -> (i32, i32) {
    %c0_i32 = arith.constant 0 : i32
    %c0_i32_0 = arith.constant 0 : i32
    return %arg1, %c0_i32 : i32, i32
  }
  func.func @transform_2(%arg0: i32, %arg1: i32) -> (i32, i32) {
    %c0_i32 = arith.constant 0 : i32
    %c0_i32_0 = arith.constant 0 : i32
    %c0_i32_1 = arith.constant 0 : i32
    return %c0_i32, %c0_i32_0 : i32, i32
  }
  func.func @transform_3(%arg0: i32, %arg1: i32) -> (i32, i32) {
    %c0_i32 = arith.constant 0 : i32
    %c0_i32_0 = arith.constant 0 : i32
    return %arg0, %c0_i32 : i32, i32
  }
}

</mosaic_0001>

<llo_original>
// kernel: tpu_custom_call.1
$region0: #{tpu_custom_call.1}
  #allocation0 [shape = 'u32[]', space=smem, size = 0x4, offset = 0x4, fixed_abs, tag = 'smem constant byte address 0x4 - core index']
  #allocation1 [shape = 'u32[72,128]{1,0:T(1,128)}', space=vmem, size = 0x9000, scoped, tag = 'internal scratch']
  %s0 = inlined_call_operand.hbm [shape: bf16[16,256], index: 0, kind: input, shape index: {}]
  %s1 = inlined_call_operand.hbm [shape: bf16[256,128], index: 1, kind: input, shape index: {}]
  %s2 = inlined_call_operand.hbm [shape: f32[8,128], index: 2, kind: input, shape index: {}]
  %s3 = inlined_call_operand.hbm [shape: f32[16,128], index: 3, kind: output, shape index: {}]
  %s4 = sld [smem:[#allocation0]]
  $region57: #{tpu_custom_call.1} parent=0
    _
  %s6 = ssub.s32 1, %s4
  %s7 = scalar_select 0, %s6, %s4
  $region1: #{tpu_custom_call.1} parent=0
    #allocation2 [shape = 'u8[8192]{0}', space=vmem, size = 0x2000, scoped, tag = 'input window, operand 0']
    #allocation3 [shape = 's32[2]{0}', space=sflag, size = 0x8, scoped, tag = 'scoped memory for tpu_custom_call.1']
    #allocation4 [shape = 's32[2]{0}', space=sflag, size = 0x8, scoped, tag = 'scoped memory for tpu_custom_call.1']
    #allocation5 [shape = 'u8[65536]{0}', space=vmem, size = 0x10000, scoped, tag = 'input window, operand 1, single buffered']
    #allocation6 [shape = 's32[1]{0}', space=sflag, size = 0x4, scoped, tag = 'scoped memory for tpu_custom_call.1']
    #allocation7 [shape = 'u8[4096]{0}', space=vmem, size = 0x1000, scoped, tag = 'input window, operand 2, single buffered']
    #allocation8 [shape = 'u8[8192]{0}', space=vmem, size = 0x2000, scoped, tag = 'output window, operand 0']
    %8 = vsyncpa [#allocation3], 0
    %s9 = scalar_lea.sflag [#allocation3], 1
    %10 = vsyncpa %s9, 0
    %11 = vsyncpa [#allocation6], 0
    %12 = vsyncpa [#allocation4], 0
    %s13 = scalar_lea.sflag [#allocation4], 1
    %14 = vsyncpa %s13, 0
    loop: start=0, step=1, limit=4
    $region2: #{tpu_custom_call.1} parent=1 // loop_pre_header
      _
    $region3: #{tpu_custom_call.1} parent=1 // loop_header
      %s16 = sphi 0, %s20
      %p17 = scmp.ge.s32.totalorder %s16, 4
      %s23 = sphi 0, %s35
      %s24 = sphi 0, %s31
      %s25 = sphi 0, %s23
      %s26 = sphi 0, %s24
      %s27 = sphi 0, %s25
      %s28 = sphi 0, %s26
      %s40 = sphi 0, %s42
      %s43 = sphi 0, %s40
      %s44 = sphi 0, %s43
      %s60 = sphi 0, %s44
      %s66 = sphi 0, %s68
      %s69 = sphi 0, %s66
      %s70 = sphi 0, %s69
      %s86 = sphi 0, %s70
      %s90 = sphi 0, %s90
      %s92 = sphi 0, %s90
      %s93 = sphi 0, %s92
      %s107 = sphi 0, %s93
      %s113 = sphi 0, %s115
      %s116 = sphi 0, %s113
      %s117 = sphi 0, %s116
      %s133 = sphi 0, %s117
    $region4: #{tpu_custom_call.1} parent=1 // loop_header_branch
      %19 = sbr.rel (%p17) target = $region8
    $region5: #{tpu_custom_call.1} parent=1 // loop_body
      %s21 = ssub.s32 %s16, 1
      %s22 = ssub.s32 %s16, 2
      %s29 = sadd.s32 1, %s24
      %p30 = scmp.ge.s32.totalorder %s29, 1
      %s31 = scalar_select %p30, 0, %s29
      %s32 = sadd.s32 1, %s23
      %s33 = scalar_select %p30, %s32, %s23
      %p34 = scmp.ge.s32.totalorder %s33, 2
      %s35 = scalar_select %p34, 0, %s33
      %s36 = ssub.s32 %s23, %s35
      %s37 = ssub.s32 %s24, %s31
      %s38 = sor.u32 %s36, %s37
      %p39 = scmp.eq.s32.totalorder %s38, 0
      %s41 = sadd.s32 %s40, 1
      %s42 = scalar_select %p39, %s40, %s41
      %p45 = pneg %p39
      %p46 = scmp.eq.s32.totalorder %s16, 1
      %p47 = por %p45, %p46
      %p48 = scmp.ne.s32.totalorder %s40, %s43
      %p49 = scmp.eq.s32.totalorder %s16, 0
      %p50 = por %p48, %p49
      %p51 = scmp.ne.s32.totalorder %s40, %s43
      %p52 = scmp.eq.s32.totalorder %s21, 1
      %p53 = por %p51, %p52
      %p54 = scmp.ne.s32.totalorder %s43, %s44
      %p55 = scmp.eq.s32.totalorder %s21, 0
      %p56 = por %p54, %p55
      %p57 = scmp.ne.s32.totalorder %s43, %s44
      %p58 = scmp.eq.s32.totalorder %s22, 1
      %p59 = por %p57, %p58
      %p61 = scmp.ne.s32.totalorder %s44, %s60
      %p62 = scmp.eq.s32.totalorder %s22, 0
      %p63 = por %p61, %p62
      %s64 = ssub.s32 %s24, %s31
      %p65 = scmp.eq.s32.totalorder %s64, 0
      %s67 = sadd.s32 %s66, 1
      %s68 = scalar_select %p65, %s66, %s67
      %p71 = pneg %p65
      %p72 = scmp.eq.s32.totalorder %s16, 1
      %p73 = por %p71, %p72
      %p74 = scmp.ne.s32.totalorder %s66, %s69
      %p75 = scmp.eq.s32.totalorder %s16, 0
      %p76 = por %p74, %p75
      %p77 = scmp.ne.s32.totalorder %s66, %s69
      %p78 = scmp.eq.s32.totalorder %s21, 1
      %p79 = por %p77, %p78
      %p80 = scmp.ne.s32.totalorder %s69, %s70
      %p81 = scmp.eq.s32.totalorder %s21, 0
      %p82 = por %p80, %p81
      %p83 = scmp.ne.s32.totalorder %s69, %s70
      %p84 = scmp.eq.s32.totalorder %s22, 1
      %p85 = por %p83, %p84
      %p87 = scmp.ne.s32.totalorder %s70, %s86
      %p88 = scmp.eq.s32.totalorder %s22, 0
      %p89 = por %p87, %p88
      %s91 = sadd.s32 %s90, 1
      %p94 = scmp.eq.s32.totalorder %s16, 1
      %p95 = scmp.ne.s32.totalorder %s90, %s92
      %p96 = scmp.eq.s32.totalorder %s16, 0
      %p97 = por %p95, %p96
      %p98 = scmp.ne.s32.totalorder %s90, %s92
      %p99 = scmp.eq.s32.totalorder %s21, 1
      %p100 = por %p98, %p99
      %p101 = scmp.ne.s32.totalorder %s92, %s93
      %p102 = scmp.eq.s32.totalorder %s21, 0
      %p103 = por %p101, %p102
      %p104 = scmp.ne.s32.totalorder %s92, %s93
      %p105 = scmp.eq.s32.totalorder %s22, 1
      %p106 = por %p104, %p105
      %p108 = scmp.ne.s32.totalorder %s93, %s107
      %p109 = scmp.eq.s32.totalorder %s22, 0
      %p110 = por %p108, %p109
      %s111 = ssub.s32 %s23, %s35
      %p112 = scmp.eq.s32.totalorder %s111, 0
      %s114 = sadd.s32 %s113, 1
      %s115 = scalar_select %p112, %s113, %s114
      %p118 = pneg %p112
      %p119 = scmp.eq.s32.totalorder %s16, 1
      %p120 = por %p118, %p119
      %p121 = scmp.ne.s32.totalorder %s113, %s116
      %p122 = scmp.eq.s32.totalorder %s16, 0
      %p123 = por %p121, %p122
      %p124 = scmp.ne.s32.totalorder %s113, %s116
      %p125 = scmp.eq.s32.totalorder %s21, 1
      %p126 = por %p124, %p125
      %p127 = scmp.ne.s32.totalorder %s116, %s117
      %p128 = scmp.eq.s32.totalorder %s21, 0
      %p129 = por %p127, %p128
      %p130 = scmp.ne.s32.totalorder %s116, %s117
      %p131 = scmp.eq.s32.totalorder %s22, 1
      %p132 = por %p130, %p131
      %p134 = scmp.ne.s32.totalorder %s117, %s133
      %p135 = scmp.eq.s32.totalorder %s22, 0
      %p136 = por %p134, %p135
      %p137 = scmp.le.s32.totalorder 1, %s16
      %p138 = scmp.lt.s32.totalorder %s16, 3
      %p139 = pnand %p137, %p138
      %p140 = pneg %p139
      // Predicated region
      $region9: #{tpu_custom_call.1} parent=5 // pred_check
        _
      $region10: #{tpu_custom_call.1} parent=5 // pred_check_branch
        %142 = sbr.rel (%p139) target = $region12
      $region11: #{tpu_custom_call.1} parent=5 // pred_region
        %s143 = ssub.s32 %s16, 1
        // Predicated region
        $region13: #{tpu_custom_call.1} parent=11 // pred_check
          %p144 = pneg %p82
        $region14: #{tpu_custom_call.1} parent=11 // pred_check_branch
          %146 = sbr.rel (%p144) target = $region16
        $region15: #{tpu_custom_call.1} parent=11 // pred_region
          %s147 = smul.u32 32, %s26
          %149 = vsyncadd [#allocation6], 0
          %s150 = smul.addr %s147, 4
          %s151 = scalar_lea.hbm %s1, %s150
          %s152 = sshll.u32 %s151, 4
          %s153 = int_to_ptr.hbm [resolvable:$true] %s152
          %s154 = sshll.u32 [#allocation5], 4
          %s155 = int_to_ptr.vmem [resolvable:$true] %s154
          %160 = dma.hbm_to_vmem [thread:$0]  %s153, 2048, %s155, [#allocation6], 64, 64, 4
        $region16: #{tpu_custom_call.1} parent=11 // pred_fallthru
          _
        // Predicated region
        $region17: #{tpu_custom_call.1} parent=11 // pred_check
          %p161 = pneg %p103
        $region18: #{tpu_custom_call.1} parent=11 // pred_check_branch
          %163 = sbr.rel (%p161) target = $region20
        $region19: #{tpu_custom_call.1} parent=11 // pred_region
          %165 = vsyncadd [#allocation6], 0
          %s167 = sshll.u32 %s2, 4
          %s168 = int_to_ptr.hbm [resolvable:$true] %s167
          %s169 = sshll.u32 [#allocation7], 4
          %s170 = int_to_ptr.vmem [resolvable:$true] %s169
          %172 = dma.hbm_to_vmem [thread:$0]  %s168, 128, %s170, [#allocation6]
        $region20: #{tpu_custom_call.1} parent=11 // pred_fallthru
          _
      $region12: #{tpu_custom_call.1} parent=5 // pred_fallthru
        _
      %p173 = scmp.lt.s32.totalorder %s16, 2
      // Predicated region
      $region21: #{tpu_custom_call.1} parent=5 // pred_check
        %p174 = pneg %p173
      $region22: #{tpu_custom_call.1} parent=5 // pred_check_branch
        %176 = sbr.rel (%p174) target = $region24
      $region23: #{tpu_custom_call.1} parent=5 // pred_region
        // Predicated region
        $region25: #{tpu_custom_call.1} parent=23 // pred_check
          %p177 = pneg %p50
        $region26: #{tpu_custom_call.1} parent=23 // pred_check_branch
          %179 = sbr.rel (%p177) target = $region28
        $region27: #{tpu_custom_call.1} parent=23 // pred_region
          %s180 = sand.u32 %s40, 1
          %s181 = scalar_lea.sflag [#allocation3], %s180
          %s182 = sand.u32 %s40, 1
          %s183 = smul.addr %s182, 8
          %s184 = scalar_lea.vmem [#allocation2], %s183
          %s185 = smul.u32 2, %s24
          %187 = vsyncadd %s181, 0
          %s188 = smul.addr %s23, 2
          %s189 = sadd.s32 %s185, %s188
          %s190 = smul.addr %s189, 4
          %s191 = scalar_lea.hbm %s0, %s190
          %s193 = sshll.u32 %s191, 4
          %s194 = int_to_ptr.hbm [resolvable:$true] %s193
          %s195 = sshll.u32 %s184, 4
          %s196 = int_to_ptr.vmem [resolvable:$true] %s195
          %198 = dma.hbm_to_vmem [thread:$0]  %s194, 128, %s196, %s181
        $region28: #{tpu_custom_call.1} parent=23 // pred_fallthru
          _
      $region24: #{tpu_custom_call.1} parent=5 // pred_fallthru
        _
      %p199 = scmp.le.s32.totalorder 1, %s16
      %p200 = scmp.lt.s32.totalorder %s16, 3
      %p201 = pnand %p199, %p200
      %p202 = pneg %p201
      // Predicated region
      $region29: #{tpu_custom_call.1} parent=5 // pred_check
        _
      $region30: #{tpu_custom_call.1} parent=5 // pred_check_branch
        %204 = sbr.rel (%p201) target = $region32
      $region31: #{tpu_custom_call.1} parent=5 // pred_region
        %s205 = ssub.s32 %s16, 1
        %s206 = sand.u32 %s43, 1
        %s207 = scalar_lea.sflag [#allocation3], %s206
        %s208 = sand.u32 %s43, 1
        %s209 = smul.addr %s208, 8
        %s210 = scalar_lea.vmem [#allocation2], %s209
        // Predicated region
        $region33: #{tpu_custom_call.1} parent=31 // pred_check
          %p211 = pneg %p56
        $region34: #{tpu_custom_call.1} parent=31 // pred_check_branch
          %213 = sbr.rel (%p211) target = $region36
        $region35: #{tpu_custom_call.1} parent=31 // pred_region
          %215 = dma.done %s207, 128
        $region36: #{tpu_custom_call.1} parent=31 // pred_fallthru
          _
        // Predicated region
        $region37: #{tpu_custom_call.1} parent=31 // pred_check
          %p216 = pneg %p82
        $region38: #{tpu_custom_call.1} parent=31 // pred_check_branch
          %218 = sbr.rel (%p216) target = $region40
        $region39: #{tpu_custom_call.1} parent=31 // pred_region
          %220 = dma.done [#allocation6], 2048
        $region40: #{tpu_custom_call.1} parent=31 // pred_fallthru
          _
        // Predicated region
        $region41: #{tpu_custom_call.1} parent=31 // pred_check
          %p221 = pneg %p103
        $region42: #{tpu_custom_call.1} parent=31 // pred_check_branch
          %223 = sbr.rel (%p221) target = $region44
        $region43: #{tpu_custom_call.1} parent=31 // pred_region
          %225 = dma.done [#allocation6], 128
        $region44: #{tpu_custom_call.1} parent=31 // pred_fallthru
          _
        %s226 = sand.u32 %s43, 1
        %s227 = scalar_lea.sflag [#allocation3], %s226
        %s228 = sand.u32 %s43, 1
        %s229 = smul.addr %s228, 8
        %s230 = scalar_lea.vmem [#allocation2], %s229
        %p231 = pneg %p56
        %p232 = pneg %p53
        %p233 = pneg %p82
        %p234 = pneg %p79
        %p235 = pneg %p103
        %p236 = pneg %p100
        %p237 = pneg %p129
        %p238 = pneg %p126
        %s239 = sand.u32 %s116, 1
        %s240 = scalar_lea.sflag [#allocation4], %s239
        %s241 = sand.u32 %s116, 1
        %s242 = smul.addr %s241, 8
        %s243 = scalar_lea.vmem [#allocation8], %s242
        %s244 = smul.u32 2, %s26
        %s245 = smul.u32 32, %s26
        %v246 = vld [vmem:[%s210] sm:$0xff]
        %v247 = vld [vmem:[#allocation5] sm:$0xf]
        %v248 = vld [vmem:[#allocation5 + $0x4] sm:$0xf]
        %v249 = vld [vmem:[#allocation5 + $0x8] sm:$0xf]
        %v250 = vld [vmem:[#allocation5 + $0xc] sm:$0xf]
        %v251 = vld [vmem:[#allocation5 + $0x10] sm:$0xf]
        %v252 = vld [vmem:[#allocation5 + $0x14] sm:$0xf]
        %v253 = vld [vmem:[#allocation5 + $0x18] sm:$0xf]
        %v254 = vld [vmem:[#allocation5 + $0x1c] sm:$0xf]
        %v255 = vld [vmem:[#allocation5 + $0x20] sm:$0xf]
        %v256 = vld [vmem:[#allocation5 + $0x24] sm:$0xf]
        %v257 = vld [vmem:[#allocation5 + $0x28] sm:$0xf]
        %v258 = vld [vmem:[#allocation5 + $0x2c] sm:$0xf]
        %v259 = vld [vmem:[#allocation5 + $0x30] sm:$0xf]
        %v260 = vld [vmem:[#allocation5 + $0x34] sm:$0xf]
        %v261 = vld [vmem:[#allocation5 + $0x38] sm:$0xf]
        %v262 = vld [vmem:[#allocation5 + $0x3c] sm:$0xf]
        %v263 = vld [vmem:[#allocation5 + $0x40] sm:$0xf]
        %v264 = vld [vmem:[#allocation5 + $0x44] sm:$0xf]
        %v265 = vld [vmem:[#allocation5 + $0x48] sm:$0xf]
        %v266 = vld [vmem:[#allocation5 + $0x4c] sm:$0xf]
        %v267 = vld [vmem:[#allocation5 + $0x50] sm:$0xf]
        %v268 = vld [vmem:[#allocation5 + $0x54] sm:$0xf]
        %v269 = vld [vmem:[#allocation5 + $0x58] sm:$0xf]
        %v270 = vld [vmem:[#allocation5 + $0x5c] sm:$0xf]
        %v271 = vld [vmem:[#allocation5 + $0x60] sm:$0xf]
        %v272 = vld [vmem:[#allocation5 + $0x64] sm:$0xf]
        %v273 = vld [vmem:[#allocation5 + $0x68] sm:$0xf]
        %v274 = vld [vmem:[#allocation5 + $0x6c] sm:$0xf]
        %v275 = vld [vmem:[#allocation5 + $0x70] sm:$0xf]
        %v276 = vld [vmem:[#allocation5 + $0x74] sm:$0xf]
        %v277 = vld [vmem:[#allocation5 + $0x78] sm:$0xf]
        %v278 = vld [vmem:[#allocation5 + $0x7c] sm:$0xf]
        %v279 = vld [vmem:[#allocation7] sm:$0xff]
        %v281 = vunpack.c.l.b16 %v246
        %v282 = vunpack.c.h.b16 %v246
        %v283 = vpack.c.b16 %v281, %v281
        %v284 = vpack.c.b16 %v282, %v282
        %v319 = vunpack.c.l.b16 %v247
        %v320 = vunpack.c.l.b16 %v248
        %v321 = vunpack.c.l.b16 %v249
        %v322 = vunpack.c.l.b16 %v250
        %v323 = vunpack.c.l.b16 %v251
        %v324 = vunpack.c.l.b16 %v252
        %v325 = vunpack.c.l.b16 %v253
        %v326 = vunpack.c.l.b16 %v254
        %v327 = vunpack.c.l.b16 %v255
        %v328 = vunpack.c.l.b16 %v256
        %v329 = vunpack.c.l.b16 %v257
        %v330 = vunpack.c.l.b16 %v258
        %v331 = vunpack.c.l.b16 %v259
        %v332 = vunpack.c.l.b16 %v260
        %v333 = vunpack.c.l.b16 %v261
        %v334 = vunpack.c.l.b16 %v262
        %v335 = vunpack.c.l.b16 %v263
        %v336 = vunpack.c.l.b16 %v264
        %v337 = vunpack.c.l.b16 %v265
        %v338 = vunpack.c.l.b16 %v266
        %v339 = vunpack.c.l.b16 %v267
        %v340 = vunpack.c.l.b16 %v268
        %v341 = vunpack.c.l.b16 %v269
        %v342 = vunpack.c.l.b16 %v270
        %v343 = vunpack.c.l.b16 %v271
        %v344 = vunpack.c.l.b16 %v272
        %v345 = vunpack.c.l.b16 %v273
        %v346 = vunpack.c.l.b16 %v274
        %v347 = vunpack.c.l.b16 %v275
        %v348 = vunpack.c.l.b16 %v276
        %v349 = vunpack.c.l.b16 %v277
        %v350 = vunpack.c.l.b16 %v278
        %v351 = vpack.c.b16 %v320, %v319
        %v352 = vpack.c.b16 %v322, %v321
        %v353 = vpack.c.b16 %v324, %v323
        %v354 = vpack.c.b16 %v326, %v325
        %v355 = vpack.c.b16 %v328, %v327
        %v356 = vpack.c.b16 %v330, %v329
        %v357 = vpack.c.b16 %v332, %v331
        %v358 = vpack.c.b16 %v334, %v333
        %v359 = vpack.c.b16 %v336, %v335
        %v360 = vpack.c.b16 %v338, %v337
        %v361 = vpack.c.b16 %v340, %v339
        %v362 = vpack.c.b16 %v342, %v341
        %v363 = vpack.c.b16 %v344, %v343
        %v364 = vpack.c.b16 %v346, %v345
        %v365 = vpack.c.b16 %v348, %v347
        %v366 = vpack.c.b16 %v350, %v349
        %383 = vmatpush.bf16.msra.mxu0 %v358
        %384 = vmatpush.bf16.msra.mxu0 %v357
        %385 = vmatpush.bf16.msra.mxu0 %v356
        %386 = vmatpush.bf16.msra.mxu0 %v355
        %387 = vmatpush.bf16.msra.mxu0 %v354
        %388 = vmatpush.bf16.msra.mxu0 %v353
        %389 = vmatpush.bf16.msra.mxu0 %v352
        %390 = vmatpush.bf16.msra.mxu0 %v351
        %391 = vmatmul.bf16.gmra.mxu0 %v283
        %v392 = vpop.f32.mrf.mxu0
        %v393 = vadd.f32 %v279, %v392
        %v394 = vpop.f32.mrf.mxu0
        %395 = vdwg.mxu0
        %396 = vmatpush.bf16.msra.mxu0 %v366
        %397 = vmatpush.bf16.msra.mxu0 %v365
        %398 = vmatpush.bf16.msra.mxu0 %v364
        %399 = vmatpush.bf16.msra.mxu0 %v363
        %400 = vmatpush.bf16.msra.mxu0 %v362
        %401 = vmatpush.bf16.msra.mxu0 %v361
        %402 = vmatpush.bf16.msra.mxu0 %v360
        %403 = vmatpush.bf16.msra.mxu0 %v359
        %404 = vmatmul.bf16.gmra.mxu0 %v284
        %v405 = vpop.f32.mrf.mxu0
        %v406 = vadd.f32 %v393, %v405
        %v407 = vpop.f32.mrf.mxu0
        %408 = vdwg.mxu0
        %409 = vst [vmem:[%s243] sm:$0xff] %v406
        %s410 = sand.u32 %s116, 1
        %s411 = scalar_lea.sflag [#allocation4], %s410
        %s412 = sand.u32 %s116, 1
        %s413 = smul.addr %s412, 8
        %s414 = scalar_lea.vmem [#allocation8], %s413
        // Predicated region
        $region45: #{tpu_custom_call.1} parent=31 // pred_check
          %p415 = pneg %p126
        $region46: #{tpu_custom_call.1} parent=31 // pred_check_branch
          %417 = sbr.rel (%p415) target = $region48
        $region47: #{tpu_custom_call.1} parent=31 // pred_region
          %419 = vsyncadd %s411, 0
          %s420 = smul.addr %s25, 8
          %s421 = scalar_lea.hbm %s3, %s420
          %s423 = sshll.u32 %s414, 4
          %s424 = int_to_ptr.vmem [resolvable:$true] %s423
          %s425 = sshll.u32 %s421, 4
          %s426 = int_to_ptr.hbm [resolvable:$true] %s425
          %428 = dma.vmem_to_hbm [thread:$0]  %s424, 128, %s426, %s411
        $region48: #{tpu_custom_call.1} parent=31 // pred_fallthru
          _
      $region32: #{tpu_custom_call.1} parent=5 // pred_fallthru
        _
      %p429 = scmp.le.s32.totalorder 2, %s16
      // Predicated region
      $region49: #{tpu_custom_call.1} parent=5 // pred_check
        %p430 = pneg %p429
      $region50: #{tpu_custom_call.1} parent=5 // pred_check_branch
        %432 = sbr.rel (%p430) target = $region52
      $region51: #{tpu_custom_call.1} parent=5 // pred_region
        %s433 = ssub.s32 %s16, 2
        // Predicated region
        $region53: #{tpu_custom_call.1} parent=51 // pred_check
          %p434 = pneg %p132
        $region54: #{tpu_custom_call.1} parent=51 // pred_check_branch
          %436 = sbr.rel (%p434) target = $region56
        $region55: #{tpu_custom_call.1} parent=51 // pred_region
          %s437 = sand.u32 %s117, 1
          %s438 = scalar_lea.sflag [#allocation4], %s437
          %s439 = sand.u32 %s117, 1
          %s440 = smul.addr %s439, 8
          %s441 = scalar_lea.vmem [#allocation8], %s440
          %443 = dma.done %s438, 128
        $region56: #{tpu_custom_call.1} parent=51 // pred_fallthru
          _
      $region52: #{tpu_custom_call.1} parent=5 // pred_fallthru
        _
    $region6: #{tpu_custom_call.1} parent=1 // loop_footer
      %s20 = sadd.s32 1, %s16
    $region7: #{tpu_custom_call.1} parent=1 // loop_footer_branch
      %15 = sbr.rel target = $region3
    $region8: #{tpu_custom_call.1} parent=1 // loop_exit
      _
    %444 = vsyncpa [#allocation3], 1
    %s445 = scalar_lea.sflag [#allocation3], 1
    %446 = vsyncpa %s445, 1
    %447 = vsyncpa [#allocation6], 1
    %448 = vsyncpa [#allocation4], 1
    %s449 = scalar_lea.sflag [#allocation4], 1
    %450 = vsyncpa %s449, 1

</llo_original>
